<compile_context>
chip_gen: v5e
topology: v5e:2x2
jax: 0.10.0
libtpu: 0.0.40
codegen_flags: <defaults>
</compile_context>

<pallas_src>
import math

import jax
import jax.numpy as jnp
from jax.experimental import pallas as pl
from jax.experimental.pallas import tpu as pltpu

_VMEM_LIMIT_BYTES = 40 * 1024 * 1024  # covers 6x block double-buffering, < v7x's 64 MiB


def _pe_add_kernel(x_ref, pe_ref, o_ref):
    # Preferred path: x_ref/pe_ref/o_ref all (tile_l, tile_d) -> same-shape add.
    # Fallback path:  x_ref/o_ref (tile_b, tile_n), pe_ref (1, tile_n) -> row broadcast.
    o_ref[...] = x_ref[...] + pe_ref[...]


def make_positional_encoding_table(d_model, max_len=5000, dtype=jnp.float32):
    """Builds the same pe buffer as the PyTorch module, shape (max_len, d_model)."""
    position = jnp.arange(max_len, dtype=jnp.float32)[:, None]
    div_term = jnp.exp(
        jnp.arange(0, d_model, 2, dtype=jnp.float32) * (-math.log(10000.0) / d_model)
    )
    pe = jnp.zeros((max_len, d_model), jnp.float32)
    pe = pe.at[:, 0::2].set(jnp.sin(position * div_term))
    pe = pe.at[:, 1::2].set(jnp.cos(position * div_term[: d_model // 2]))  # odd d_model safe
    return pe.astype(dtype)


def _pick_tile(dim, granule, max_elems):
    """Largest divisor of `dim` that is a multiple of `granule` and <= max_elems.

    Result always satisfies the (8,128) BlockSpec rule: either a multiple of
    `granule` or the full `dim`.
    """
    best = None
    d = granule
    limit = min(dim, max_elems)
    while d <= limit:
        if dim % d == 0:
            best = d
        d += granule
    if best is not None:
        return best
    if dim % granule == 0:
        return granule          # smallest legal tile (may exceed the budget)
    return dim                  # no conforming divisor: take the full dim


def _default_block_budget_bytes():
    # v5e: ~3 MiB blocks (16 MiB scoped-VMEM default, ~820 GB/s HBM already hides
    # the 0.35 us/step overhead); v6e/v7x: ~6 MiB blocks amortize it further.
    try:
        kind = jax.devices()[0].device_kind.lower()
    except Exception:
        return 4 * 1024 * 1024
    if "v5 lite" in kind or "v5e" in kind or "v5lite" in kind:
        return 3 * 1024 * 1024
    return 6 * 1024 * 1024


def positional_encoding_forward(x, pe, *, block_budget_bytes=None, donate_x=False):
    """x: (B, L, d_model); pe: (max_len, d_model).  Returns x + pe[:L] (eval-mode)."""
    B, L, D = x.shape
    dtype = x.dtype
    itemsize = jnp.dtype(dtype).itemsize
    if block_budget_bytes is None:
        block_budget_bytes = _default_block_budget_bytes()

    pe_l = pe[:L, :].astype(dtype)
    aliases = {0: 0} if donate_x else {}
    cost = pl.CostEstimate(
        flops=B * L * D,
        transcendentals=0,
        bytes_accessed=(2 * B * L * D + L * D) * itemsize,
    )

    if D % 128 == 0:
        # --- preferred path: sublanes = sequence positions, lanes = d_model ----
        tile_d = _pick_tile(D, 128, max(128, block_budget_bytes // (8 * itemsize)))
        tile_l = _pick_tile(L, 8, max(8, block_budget_bytes // (tile_d * itemsize)))
        if B == 1 and tile_l == L and tile_d == D:
            # Keep >= 2 grid steps so both v7x TensorCores get work.
            if L % 16 == 0:
                tile_l = _pick_tile(L, 8, L // 2)
            elif D % 256 == 0:
                tile_d = _pick_tile(D, 128, D // 2)
        grid = (B, L // tile_l, D // tile_d)
        return pl.pallas_call(
            _pe_add_kernel,
            grid=grid,
            in_specs=[
                pl.BlockSpec((None, tile_l, tile_d), lambda b, l, d: (b, l, d)),
                pl.BlockSpec((tile_l, tile_d), lambda b, l, d: (l, d)),
            ],
            out_specs=pl.BlockSpec((None, tile_l, tile_d), lambda b, l, d: (b, l, d)),
            out_shape=jax.ShapeDtypeStruct((B, L, D), dtype),
            compiler_params=pltpu.CompilerParams(
                dimension_semantics=("parallel", "parallel", "parallel"),
                vmem_limit_bytes=_VMEM_LIMIT_BYTES,
            ),
            cost_estimate=cost,
            input_output_aliases=aliases,
        )(x, pe_l)

    # --- fallback path (d_model not a multiple of 128): flatten features ------
    N = L * D
    x2 = x.reshape(B, N)            # row-major contiguous: layout plumbing only
    pe_row = pe_l.reshape(1, N)
    if N % 128 == 0:
        tile_n = _pick_tile(N, 128, max(128, block_budget_bytes // (8 * itemsize)))
    else:
        tile_n = N
    tile_b = _pick_tile(B, 8, max(8, block_budget_bytes // (tile_n * itemsize)))
    if (B // tile_b) * (N // tile_n) == 1:
        # Keep >= 2 grid steps when possible (v7x has 2 TensorCores).
        if N % 256 == 0:
            tile_n = _pick_tile(N, 128, N // 2)
        elif B % 16 == 0:
            tile_b = _pick_tile(B, 8, B // 2)
    grid = (B // tile_b, N // tile_n)
    out = pl.pallas_call(
        _pe_add_kernel,
        grid=grid,
        in_specs=[
            pl.BlockSpec((tile_b, tile_n), lambda i, j: (i, j)),
            pl.BlockSpec((1, tile_n), lambda i, j: (0, j)),
        ],
        out_specs=pl.BlockSpec((tile_b, tile_n), lambda i, j: (i, j)),
        out_shape=jax.ShapeDtypeStruct((B, N), dtype),
        compiler_params=pltpu.CompilerParams(
            dimension_semantics=("parallel", "parallel"),
            vmem_limit_bytes=_VMEM_LIMIT_BYTES,
        ),
        cost_estimate=cost,
        input_output_aliases=aliases,
    )(x2, pe_row)
    return out.reshape(B, L, D)


if __name__ == "__main__":
    key = jax.random.PRNGKey(0)
    k1, k2, k3 = jax.random.split(key, 3)

    # Case 1: module-typical small shape, d_model = 64 (fallback flattened path).
    B, L, D = 2, 8, 64
    pe64 = make_positional_encoding_table(D, max_len=5000)
    x1 = jax.random.normal(k1, (B, L, D), jnp.float32)
    out1 = jax.jit(positional_encoding_forward)(x1, pe64)
    jax.block_until_ready(out1)
    ref1 = x1 + pe64[None, :L, :]
    assert out1.shape == (B, L, D)
    assert bool(jnp.all(jnp.isfinite(out1)))
    assert bool(jnp.allclose(out1, ref1, atol=1e-6, rtol=1e-6))

    # Case 2: lane-dense d_model = 128 (preferred (rows, D) path).
    L2, D2 = 16, 128
    pe128 = make_positional_encoding_table(D2, max_len=5000)
    x2 = jax.random.normal(k2, (2, L2, D2), jnp.float32)
    out2 = jax.jit(positional_encoding_forward)(x2, pe128)
    jax.block_until_ready(out2)
    ref2 = x2 + pe128[None, :L2, :]
    assert bool(jnp.allclose(out2, ref2, atol=1e-6, rtol=1e-6))

    # Case 3: bf16 activations (kernel follows x.dtype -> half the HBM traffic).
    x3 = jax.random.normal(k3, (4, 8, D2), jnp.float32).astype(jnp.bfloat16)
    out3 = jax.jit(positional_encoding_forward)(x3, pe128)
    jax.block_until_ready(out3)
    ref3 = x3 + pe128[None, :8, :].astype(jnp.bfloat16)
    assert bool(
        jnp.allclose(out3.astype(jnp.float32), ref3.astype(jnp.float32), atol=1e-2, rtol=1e-2)
    )

    print("KERNEL_OK")
</pallas_src>

<mosaic_0001>
module attributes {stable_mosaic.version = 11 : i64} {
  func.func @_pe_add_kernel(%arg0: i32, %arg1: i32, %arg2: memref<2x256xf32, #tpu.memory_space<vmem>>, %arg3: memref<1x256xf32, #tpu.memory_space<vmem>>, %arg4: memref<2x256xf32, #tpu.memory_space<vmem>>) attributes {dimension_semantics = [#tpu.dimension_semantics<parallel>, #tpu.dimension_semantics<parallel>], iteration_bounds = array<i64: 1, 2>, scalar_prefetch = 0 : i64, scratch_operands = 0 : i64, tpu.core_type = #tpu.core_type<tc>, window_params = [{transform_indices = @transform_0, window_bounds = array<i64: 2, 256>}, {transform_indices = @transform_1, window_bounds = array<i64: 1, 256>}, {transform_indices = @transform_2, window_bounds = array<i64: 2, 256>}]} {
    %c0 = arith.constant 0 : index
    %c0_0 = arith.constant 0 : index
    %0 = vector.load %arg2[%c0, %c0_0] : memref<2x256xf32, #tpu.memory_space<vmem>>, vector<2x256xf32>
    %c0_1 = arith.constant 0 : index
    %c0_2 = arith.constant 0 : index
    %1 = vector.load %arg3[%c0_1, %c0_2] : memref<1x256xf32, #tpu.memory_space<vmem>>, vector<1x256xf32>
    %2 = vector.broadcast %1 : vector<1x256xf32> to vector<2x256xf32>
    %3 = arith.addf %0, %2 : vector<2x256xf32>
    %c0_3 = arith.constant 0 : index
    %c0_4 = arith.constant 0 : index
    %4 = vector.load %arg4[%c0_3, %c0_4] : memref<2x256xf32, #tpu.memory_space<vmem>>, vector<2x256xf32>
    tpu.vector_store %arg4[%c0_3, %c0_4], %3 {strides = array<i32>} : memref<2x256xf32, #tpu.memory_space<vmem>>, vector<2x256xf32>,
    return
  }
  func.func @transform_0(%arg0: i32, %arg1: i32) -> (i32, i32) {
    %c0_i32 = arith.constant 0 : i32
    return %arg0, %arg1 : i32, i32
  }
  func.func @transform_1(%arg0: i32, %arg1: i32) -> (i32, i32) {
    %c0_i32 = arith.constant 0 : i32
    %c0_i32_0 = arith.constant 0 : i32
    return %c0_i32, %arg1 : i32, i32
  }
  func.func @transform_2(%arg0: i32, %arg1: i32) -> (i32, i32) {
    %c0_i32 = arith.constant 0 : i32
    return %arg0, %arg1 : i32, i32
  }
}

</mosaic_0001>

<llo_original>
// kernel: positional_encoding_forward.1
$region0: #{positional_encoding_forward.1}
  #allocation0 [shape = 'u32[]', space=smem, size = 0x4, offset = 0x4, fixed_abs, tag = 'smem constant byte address 0x4 - core index']
  #allocation1 [shape = 'u32[72,128]{1,0:T(1,128)}', space=vmem, size = 0x9000, scoped, tag = 'internal scratch']
  %s0 = inlined_call_operand.vmem [shape: f32[2,512], index: 0, kind: input, shape index: {}]
  %s1 = inlined_call_operand.vmem [shape: f32[1,512], index: 1, kind: input, shape index: {}]
  %s2 = inlined_call_operand.vmem [shape: f32[2,512], index: 2, kind: output, shape index: {}]
  %s3 = sld [smem:[#allocation0]]
  $region41: #{positional_encoding_forward.1} parent=0
    _
  %s5 = ssub.s32 1, %s3
  %s6 = scalar_select 0, %s5, %s3
  loop: start=0, step=1, limit=4
  $region2: #{positional_encoding_forward.1} parent=0 // loop_pre_header
    _
  $region3: #{positional_encoding_forward.1} parent=0 // loop_header
    %s8 = sphi 0, %s12
    %p9 = scmp.ge.s32.totalorder %s8, 4
    %s15 = sphi 0, %s27
    %s16 = sphi 0, %s23
    %s17 = sphi 0, %s15
    %s18 = sphi 0, %s16
    %s19 = sphi 0, %s17
    %s20 = sphi 0, %s18
    %s32 = sphi 0, %s34
    %s35 = sphi 0, %s32
    %s36 = sphi 0, %s35
    %s52 = sphi 0, %s36
    %s58 = sphi 0, %s60
    %s61 = sphi 0, %s58
    %s62 = sphi 0, %s61
    %s78 = sphi 0, %s62
    %s86 = sphi 0, %s88
    %s89 = sphi 0, %s86
    %s90 = sphi 0, %s89
    %s106 = sphi 0, %s90
  $region4: #{positional_encoding_forward.1} parent=0 // loop_header_branch
    %11 = sbr.rel (%p9) target = $region8
  $region5: #{positional_encoding_forward.1} parent=0 // loop_body
    %s13 = ssub.s32 %s8, 1
    %s14 = ssub.s32 %s8, 2
    %s21 = sadd.s32 1, %s16
    %p22 = scmp.ge.s32.totalorder %s21, 2
    %s23 = scalar_select %p22, 0, %s21
    %s24 = sadd.s32 1, %s15
    %s25 = scalar_select %p22, %s24, %s15
    %p26 = scmp.ge.s32.totalorder %s25, 1
    %s27 = scalar_select %p26, 0, %s25
    %s28 = ssub.s32 %s15, %s27
    %s29 = ssub.s32 %s16, %s23
    %s30 = sor.u32 %s28, %s29
    %p31 = scmp.eq.s32.totalorder %s30, 0
    %s33 = sadd.s32 %s32, 1
    %s34 = scalar_select %p31, %s32, %s33
    %p37 = pneg %p31
    %p38 = scmp.eq.s32.totalorder %s8, 1
    %p39 = por %p37, %p38
    %p40 = scmp.ne.s32.totalorder %s32, %s35
    %p41 = scmp.eq.s32.totalorder %s8, 0
    %p42 = por %p40, %p41
    %p43 = scmp.ne.s32.totalorder %s32, %s35
    %p44 = scmp.eq.s32.totalorder %s13, 1
    %p45 = por %p43, %p44
    %p46 = scmp.ne.s32.totalorder %s35, %s36
    %p47 = scmp.eq.s32.totalorder %s13, 0
    %p48 = por %p46, %p47
    %p49 = scmp.ne.s32.totalorder %s35, %s36
    %p50 = scmp.eq.s32.totalorder %s14, 1
    %p51 = por %p49, %p50
    %p53 = scmp.ne.s32.totalorder %s36, %s52
    %p54 = scmp.eq.s32.totalorder %s14, 0
    %p55 = por %p53, %p54
    %s56 = ssub.s32 %s16, %s23
    %p57 = scmp.eq.s32.totalorder %s56, 0
    %s59 = sadd.s32 %s58, 1
    %s60 = scalar_select %p57, %s58, %s59
    %p63 = pneg %p57
    %p64 = scmp.eq.s32.totalorder %s8, 1
    %p65 = por %p63, %p64
    %p66 = scmp.ne.s32.totalorder %s58, %s61
    %p67 = scmp.eq.s32.totalorder %s8, 0
    %p68 = por %p66, %p67
    %p69 = scmp.ne.s32.totalorder %s58, %s61
    %p70 = scmp.eq.s32.totalorder %s13, 1
    %p71 = por %p69, %p70
    %p72 = scmp.ne.s32.totalorder %s61, %s62
    %p73 = scmp.eq.s32.totalorder %s13, 0
    %p74 = por %p72, %p73
    %p75 = scmp.ne.s32.totalorder %s61, %s62
    %p76 = scmp.eq.s32.totalorder %s14, 1
    %p77 = por %p75, %p76
    %p79 = scmp.ne.s32.totalorder %s62, %s78
    %p80 = scmp.eq.s32.totalorder %s14, 0
    %p81 = por %p79, %p80
    %s82 = ssub.s32 %s15, %s27
    %s83 = ssub.s32 %s16, %s23
    %s84 = sor.u32 %s82, %s83
    %p85 = scmp.eq.s32.totalorder %s84, 0
    %s87 = sadd.s32 %s86, 1
    %s88 = scalar_select %p85, %s86, %s87
    %p91 = pneg %p85
    %p92 = scmp.eq.s32.totalorder %s8, 1
    %p93 = por %p91, %p92
    %p94 = scmp.ne.s32.totalorder %s86, %s89
    %p95 = scmp.eq.s32.totalorder %s8, 0
    %p96 = por %p94, %p95
    %p97 = scmp.ne.s32.totalorder %s86, %s89
    %p98 = scmp.eq.s32.totalorder %s13, 1
    %p99 = por %p97, %p98
    %p100 = scmp.ne.s32.totalorder %s89, %s90
    %p101 = scmp.eq.s32.totalorder %s13, 0
    %p102 = por %p100, %p101
    %p103 = scmp.ne.s32.totalorder %s89, %s90
    %p104 = scmp.eq.s32.totalorder %s14, 1
    %p105 = por %p103, %p104
    %p107 = scmp.ne.s32.totalorder %s90, %s106
    %p108 = scmp.eq.s32.totalorder %s14, 0
    %p109 = por %p107, %p108
    %p110 = scmp.le.s32.totalorder 1, %s8
    %p111 = scmp.lt.s32.totalorder %s8, 3
    %p112 = pnand %p110, %p111
    %p113 = pneg %p112
    // Predicated region
    $region9: #{positional_encoding_forward.1} parent=5 // pred_check
      _
    $region10: #{positional_encoding_forward.1} parent=5 // pred_check_branch
      %115 = sbr.rel (%p112) target = $region12
    $region11: #{positional_encoding_forward.1} parent=5 // pred_region
      %s116 = ssub.s32 %s8, 1
    $region12: #{positional_encoding_forward.1} parent=5 // pred_fallthru
      _
    %p117 = scmp.lt.s32.totalorder %s8, 2
    // Predicated region
    $region13: #{positional_encoding_forward.1} parent=5 // pred_check
      %p118 = pneg %p117
    $region14: #{positional_encoding_forward.1} parent=5 // pred_check_branch
      %120 = sbr.rel (%p118) target = $region16
    $region15: #{positional_encoding_forward.1} parent=5 // pred_region
      // Predicated region
      $region17: #{positional_encoding_forward.1} parent=15 // pred_check
        %p121 = pneg %p42
      $region18: #{positional_encoding_forward.1} parent=15 // pred_check_branch
        %123 = sbr.rel (%p121) target = $region20
      $region19: #{positional_encoding_forward.1} parent=15 // pred_region
        %s124 = smul.u32 2, %s16
        %p125 = scmp.lt.s32.totalorder %s15, 0
        %s126 = scalar_select %p125, %s15, 0
        %p127 = scmp.lt.s32.totalorder %s124, 3
        %s128 = scalar_select %p127, %s124, 3
        %s129 = smul.addr %s126, 4
        %s130 = sadd.s32 %s128, %s129
        %s131 = smul.addr %s130, 2
        %s132 = scalar_lea.vmem %s0, %s131
        %s133 = smul.u32 2, %s16
      $region20: #{positional_encoding_forward.1} parent=15 // pred_fallthru
        _
      // Predicated region
      $region21: #{positional_encoding_forward.1} parent=15 // pred_check
        %p134 = pneg %p68
      $region22: #{positional_encoding_forward.1} parent=15 // pred_check_branch
        %136 = sbr.rel (%p134) target = $region24
      $region23: #{positional_encoding_forward.1} parent=15 // pred_region
        %s137 = smul.u32 2, %s16
        %p138 = scmp.lt.s32.totalorder %s137, 3
        %s139 = scalar_select %p138, %s137, 3
        %s140 = scalar_lea.vmem %s1, %s139
        %s141 = smul.u32 2, %s16
      $region24: #{positional_encoding_forward.1} parent=15 // pred_fallthru
        _
    $region16: #{positional_encoding_forward.1} parent=5 // pred_fallthru
      _
    %p142 = scmp.le.s32.totalorder 1, %s8
    %p143 = scmp.lt.s32.totalorder %s8, 3
    %p144 = pnand %p142, %p143
    %p145 = pneg %p144
    // Predicated region
    $region25: #{positional_encoding_forward.1} parent=5 // pred_check
      _
    $region26: #{positional_encoding_forward.1} parent=5 // pred_check_branch
      %147 = sbr.rel (%p144) target = $region28
    $region27: #{positional_encoding_forward.1} parent=5 // pred_region
      %s148 = ssub.s32 %s8, 1
      %s149 = smul.u32 2, %s18
      %p150 = scmp.lt.s32.totalorder %s17, 0
      %s151 = scalar_select %p150, %s17, 0
      %p152 = scmp.lt.s32.totalorder %s149, 3
      %s153 = scalar_select %p152, %s149, 3
      %s154 = smul.addr %s151, 4
      %s155 = sadd.s32 %s153, %s154
      %s156 = smul.addr %s155, 2
      %s157 = scalar_lea.vmem %s0, %s156
      %p158 = pneg %p48
      %p159 = pneg %p45
      %s160 = smul.u32 2, %s18
      %p161 = scmp.lt.s32.totalorder %s160, 3
      %s162 = scalar_select %p161, %s160, 3
      %s163 = scalar_lea.vmem %s1, %s162
      %p164 = pneg %p74
      %p165 = pneg %p71
      %p166 = pneg %p102
      %p167 = pneg %p99
      %s168 = smul.u32 2, %s18
      %p169 = scmp.lt.s32.totalorder %s17, 0
      %s170 = scalar_select %p169, %s17, 0
      %p171 = scmp.lt.s32.totalorder %s168, 3
      %s172 = scalar_select %p171, %s168, 3
      %s173 = smul.addr %s170, 4
      %s174 = sadd.s32 %s172, %s173
      %s175 = smul.addr %s174, 2
      %s176 = scalar_lea.vmem %s2, %s175
      %s177 = smul.u32 2, %s18
      %p178 = scmp.lt.s32.totalorder %s17, 0
      %s179 = scalar_select %p178, %s17, 0
      %p180 = scmp.lt.s32.totalorder %s177, 3
      %s181 = scalar_select %p180, %s177, 3
      %s182 = smul.addr %s179, 4
      %s183 = sadd.s32 %s181, %s182
      %s184 = smul.addr %s183, 2
      %s185 = scalar_lea.vmem %s0, %s184
      %s186 = smul.u32 2, %s18
      %s187 = smul.u32 2, %s18
      %p188 = scmp.lt.s32.totalorder %s187, 3
      %s189 = scalar_select %p188, %s187, 3
      %s190 = scalar_lea.vmem %s1, %s189
      %s191 = smul.u32 2, %s18
      %s192 = smul.u32 2, %s18
      %p193 = scmp.lt.s32.totalorder %s17, 0
      %s194 = scalar_select %p193, %s17, 0
      %p195 = scmp.lt.s32.totalorder %s192, 3
      %s196 = scalar_select %p195, %s192, 3
      %s197 = smul.addr %s194, 4
      %s198 = sadd.s32 %s196, %s197
      %s199 = smul.addr %s198, 2
      %s200 = scalar_lea.vmem %s2, %s199
      %s201 = smul.u32 2, %s18
      %v202 = vld [vmem:[%s185] sm:$0xf]
      %v203 = vld [vmem:[%s190] sm:$0x3]
      %v205 = vperm.slane %v203, 0
      %v206 = vperm.slane %v203, 1
      %v207 = vrot.slane %v206, 6
      %vm208 = vcmask 1041408
      %v209 = vsel %vm208, %v205, %v207
      %v211 = vadd.f32 %v202, %v209
      %212 = vst [vmem:[%s200] sm:$0xf] %v211
      %s213 = smul.u32 2, %s18
      %p214 = scmp.lt.s32.totalorder %s17, 0
      %s215 = scalar_select %p214, %s17, 0
      %p216 = scmp.lt.s32.totalorder %s213, 3
      %s217 = scalar_select %p216, %s213, 3
      %s218 = smul.addr %s215, 4
      %s219 = sadd.s32 %s217, %s218
      %s220 = smul.addr %s219, 2
      %s221 = scalar_lea.vmem %s2, %s220
      // Predicated region
      $region29: #{positional_encoding_forward.1} parent=27 // pred_check
        %p222 = pneg %p99
      $region30: #{positional_encoding_forward.1} parent=27 // pred_check_branch
        %224 = sbr.rel (%p222) target = $region32
      $region31: #{positional_encoding_forward.1} parent=27 // pred_region
        %s225 = smul.u32 2, %s18
      $region32: #{positional_encoding_forward.1} parent=27 // pred_fallthru
        _
    $region28: #{positional_encoding_forward.1} parent=5 // pred_fallthru
      _
    %p226 = scmp.le.s32.totalorder 2, %s8
    // Predicated region
    $region33: #{positional_encoding_forward.1} parent=5 // pred_check
      %p227 = pneg %p226
    $region34: #{positional_encoding_forward.1} parent=5 // pred_check_branch
      %229 = sbr.rel (%p227) target = $region36
    $region35: #{positional_encoding_forward.1} parent=5 // pred_region
      %s230 = ssub.s32 %s8, 2
      // Predicated region
      $region37: #{positional_encoding_forward.1} parent=35 // pred_check
        %p231 = pneg %p105
      $region38: #{positional_encoding_forward.1} parent=35 // pred_check_branch
        %233 = sbr.rel (%p231) target = $region40
      $region39: #{positional_encoding_forward.1} parent=35 // pred_region
        %s234 = smul.u32 2, %s20
        %p235 = scmp.lt.s32.totalorder %s19, 0
        %s236 = scalar_select %p235, %s19, 0
        %p237 = scmp.lt.s32.totalorder %s234, 3
        %s238 = scalar_select %p237, %s234, 3
        %s239 = smul.addr %s236, 4
        %s240 = sadd.s32 %s238, %s239
        %s241 = smul.addr %s240, 2
        %s242 = scalar_lea.vmem %s2, %s241
      $region40: #{positional_encoding_forward.1} parent=35 // pred_fallthru
        _
    $region36: #{positional_encoding_forward.1} parent=5 // pred_fallthru
      _
  $region6: #{positional_encoding_forward.1} parent=0 // loop_footer
    %s12 = sadd.s32 1, %s8
  $region7: #{positional_encoding_forward.1} parent=0 // loop_footer_branch
    %7 = sbr.rel target = $region3
  $region8: #{positional_encoding_forward.1} parent=0 // loop_exit
    _

</llo_original>
